<compile_context>
chip_gen: v7x
topology: tpu7x:2x2x1
jax: 0.10.0
libtpu: 0.0.40
codegen_flags: <defaults>
</compile_context>

<pallas_src>
import functools

import jax
import jax.numpy as jnp
from jax.experimental import pallas as pl
from jax.experimental.pallas import tpu as pltpu


LANE = 128  # TPU lane width; final output dim is padded to a multiple of this.


# ----------------------------- Pallas kernel --------------------------------
def _fused_mlp_kernel(*refs, n_linear):
    """Fully fused MLP forward: h = relu(h @ W_j + b_j) for all layers.

    refs = (x_ref, w0_ref, b0_ref, w1_ref, b1_ref, ..., o_ref)
    Weights are pre-transposed to (K, N); biases are (1, N). Intermediate
    activations stay in vregs/VMEM (no HBM traffic between layers).
    """
    x_ref = refs[0]
    o_ref = refs[-1]
    wb_refs = refs[1:-1]

    h = x_ref[...]
    for j in range(n_linear):
        w = wb_refs[2 * j][...]
        b = wb_refs[2 * j + 1][...]
        h = jnp.dot(h, w, preferred_element_type=jnp.float32) + b
        h = jnp.maximum(h, 0.0)  # activation='relu' after every linear
    o_ref[...] = h.astype(o_ref.dtype)


def fused_mlp_forward(x2d, fused_params):
    """One pallas_call for the entire Linear(+ReLU) stack.

    x2d:          (B, K0) f32 activations (already flattened).
    fused_params: list of (w_t (K, N), b2 (1, N)); the LAST layer is padded to
                  a lane-dense (multiple of 128) output width.
    Returns the (B, N_pad) kernel output (caller slices off the padding).
    """
    B, K0 = x2d.shape
    n_linear = len(fused_params)
    n_pad = fused_params[-1][0].shape[1]

    # NOTE: for large B, tile this axis instead: grid=(pl.cdiv(B, TB),),
    # activation/out BlockSpec (TB, K)/(TB, n_pad) with index_map lambda i:(i,0),
    # weights full-block, dimension_semantics=("parallel",).
    in_specs = [pl.BlockSpec((B, K0), lambda i: (0, 0))]
    args = [x2d]
    for (w_t, b2) in fused_params:
        K, N = w_t.shape
        in_specs.append(pl.BlockSpec((K, N), lambda i: (0, 0)))
        in_specs.append(pl.BlockSpec((1, N), lambda i: (0, 0)))
        args.append(w_t)
        args.append(b2)

    kernel = functools.partial(_fused_mlp_kernel, n_linear=n_linear)
    return pl.pallas_call(
        kernel,
        out_shape=jax.ShapeDtypeStruct((B, n_pad), x2d.dtype),
        grid=(1,),
        in_specs=in_specs,
        # Lane-dense (multiple-of-128) output block -> unmasked stores.
        out_specs=pl.BlockSpec((B, n_pad), lambda i: (0, 0)),
        compiler_params=pltpu.CompilerParams(
            dimension_semantics=("arbitrary",),
            vmem_limit_bytes=32 * 1024 * 1024,  # within v5e/v6e/v7x scoped VMEM
        ),
    )(*args)


# --------------------------- Model construction -----------------------------
def build_params(key, *, in_channels, out_channels, mid_channels, ch_mult,
                 num_linear_layers):
    """Mirror of DiscriminativeModel.__init__ channel plumbing.

    Returns nested [layer][linear] list of (w (N, K), b (N,)) in PyTorch
    orientation (used by the pure-JAX reference check).
    """
    channels = [in_channels, out_channels]
    for i in range(len(ch_mult)):
        channels.insert(1, ch_mult[i] * mid_channels)

    layers = []
    for li in range(len(channels) - 1):
        cin, cmid, cout = channels[li], channels[li + 1], channels[li + 1]
        dims = [cin] + [cmid] * (num_linear_layers - 1) + [cout]
        linears = []
        for j in range(num_linear_layers):
            key, kw, kb = jax.random.split(key, 3)
            fan_in = dims[j]
            bound = 1.0 / (fan_in ** 0.5)  # PyTorch-like uniform +/- 1/sqrt(fan_in)
            w = jax.random.uniform(kw, (dims[j + 1], dims[j]),
                                   minval=-bound, maxval=bound,
                                   dtype=jnp.float32)
            b = jax.random.uniform(kb, (dims[j + 1],),
                                   minval=-bound, maxval=bound,
                                   dtype=jnp.float32)
            linears.append((w, b))
        layers.append(linears)
    return layers


def prepare_fused_params(layers, *, lane=LANE):
    """One-time prep for the fused kernel: flatten the nested layer list,
    pre-transpose weights to (K, N), reshape biases to (1, N), and zero-pad
    the final layer's output width to a multiple of `lane` (lane-dense store).
    """
    flat = [wb for linears in layers for wb in linears]
    fused = []
    for idx, (w, b) in enumerate(flat):
        w_t = jnp.transpose(w)          # (K, N)
        b2 = b.reshape(1, -1)           # (1, N)
        if idx == len(flat) - 1:
            N = w_t.shape[1]
            n_pad = ((N + lane - 1) // lane) * lane
            if n_pad != N:
                w_t = jnp.pad(w_t, ((0, 0), (0, n_pad - N)))
                b2 = jnp.pad(b2, ((0, 0), (0, n_pad - N)))
        fused.append((w_t, b2))
    return fused


def discriminative_model_forward(x_nchw, fused_params, out_channels):
    """Forward: Flatten -> fused MLP kernel -> strip lane padding."""
    B = x_nchw.shape[0]
    h = x_nchw.reshape(B, -1)           # nn.Flatten()
    y_pad = fused_mlp_forward(h, fused_params)
    return y_pad[:, :out_channels]


# --------------------------------- Main --------------------------------------
if __name__ == "__main__":
    # Small, self-consistent config:
    #   input x: (B=2, C=4, H=4, W=4) -> flattened feature dim = 64
    B, C, H, W = 2, 4, 4, 4
    in_channels = C * H * W          # 64
    out_channels = 8
    mid_channels = 32
    ch_mult = (1, 2)                 # channels -> [64, 64, 32, 8]
    num_linear_layers = 2
    # activation='relu', normalization='none', dropout=0.0 (eval)

    key = jax.random.PRNGKey(0)
    key, kx = jax.random.split(key)
    x = jax.random.normal(kx, (B, C, H, W), dtype=jnp.float32)

    layers = build_params(
        key,
        in_channels=in_channels,
        out_channels=out_channels,
        mid_channels=mid_channels,
        ch_mult=ch_mult,
        num_linear_layers=num_linear_layers,
    )
    fused_params = prepare_fused_params(layers)
    fused_params = jax.block_until_ready(fused_params)  # one-time prep cost

    out = discriminative_model_forward(x, fused_params, out_channels)
    out = jax.block_until_ready(out)
    assert out.shape == (B, out_channels), out.shape

    # Reference check in plain JAX (same math), to validate the fused kernel.
    href = x.reshape(B, -1)
    for linears in layers:
        for (w, b) in linears:
            href = jnp.maximum(href @ w.T + b, 0.0)
    assert jnp.allclose(out, href, atol=1e-5, rtol=1e-5)

    print("KERNEL_OK")
</pallas_src>

<mosaic_0001>
module attributes {stable_mosaic.version = 11 : i64} {
  func.func @_fused_mlp_kernel(%arg0: i32, %arg1: memref<2x64xf32, #tpu.memory_space<vmem>>, %arg2: memref<64x64xf32, #tpu.memory_space<vmem>>, %arg3: memref<1x64xf32, #tpu.memory_space<vmem>>, %arg4: memref<64x64xf32, #tpu.memory_space<vmem>>, %arg5: memref<1x64xf32, #tpu.memory_space<vmem>>, %arg6: memref<64x32xf32, #tpu.memory_space<vmem>>, %arg7: memref<1x32xf32, #tpu.memory_space<vmem>>, %arg8: memref<32x32xf32, #tpu.memory_space<vmem>>, %arg9: memref<1x32xf32, #tpu.memory_space<vmem>>, %arg10: memref<32x8xf32, #tpu.memory_space<vmem>>, %arg11: memref<1x8xf32, #tpu.memory_space<vmem>>, %arg12: memref<8x128xf32, #tpu.memory_space<vmem>>, %arg13: memref<1x128xf32, #tpu.memory_space<vmem>>, %arg14: memref<2x128xf32, #tpu.memory_space<vmem>>) attributes {dimension_semantics = [#tpu.dimension_semantics<arbitrary>], iteration_bounds = array<i64: 1>, scalar_prefetch = 0 : i64, scratch_operands = 0 : i64, tpu.core_type = #tpu.core_type<tc>, window_params = [{pipeline_mode = #tpu.pipeline_mode<synchronous>, transform_indices = @transform_0, window_bounds = array<i64: 2, 64>}, {pipeline_mode = #tpu.pipeline_mode<synchronous>, transform_indices = @transform_1, window_bounds = array<i64: 64, 64>}, {pipeline_mode = #tpu.pipeline_mode<synchronous>, transform_indices = @transform_2, window_bounds = array<i64: 1, 64>}, {pipeline_mode = #tpu.pipeline_mode<synchronous>, transform_indices = @transform_3, window_bounds = array<i64: 64, 64>}, {pipeline_mode = #tpu.pipeline_mode<synchronous>, transform_indices = @transform_4, window_bounds = array<i64: 1, 64>}, {pipeline_mode = #tpu.pipeline_mode<synchronous>, transform_indices = @transform_5, window_bounds = array<i64: 64, 32>}, {pipeline_mode = #tpu.pipeline_mode<synchronous>, transform_indices = @transform_6, window_bounds = array<i64: 1, 32>}, {pipeline_mode = #tpu.pipeline_mode<synchronous>, transform_indices = @transform_7, window_bounds = array<i64: 32, 32>}, {pipeline_mode = #tpu.pipeline_mode<synchronous>, transform_indices = @transform_8, window_bounds = array<i64: 1, 32>}, {pipeline_mode = #tpu.pipeline_mode<synchronous>, transform_indices = @transform_9, window_bounds = array<i64: 32, 8>}, {pipeline_mode = #tpu.pipeline_mode<synchronous>, transform_indices = @transform_10, window_bounds = array<i64: 1, 8>}, {pipeline_mode = #tpu.pipeline_mode<synchronous>, transform_indices = @transform_11, window_bounds = array<i64: 8, 128>}, {pipeline_mode = #tpu.pipeline_mode<synchronous>, transform_indices = @transform_12, window_bounds = array<i64: 1, 128>}, {pipeline_mode = #tpu.pipeline_mode<synchronous>, transform_indices = @transform_13, window_bounds = array<i64: 2, 128>}]} {
    %c0 = arith.constant 0 : index
    %c0_0 = arith.constant 0 : index
    %0 = vector.load %arg1[%c0, %c0_0] : memref<2x64xf32, #tpu.memory_space<vmem>>, vector<2x64xf32>
    %c0_1 = arith.constant 0 : index
    %c0_2 = arith.constant 0 : index
    %1 = vector.load %arg2[%c0_1, %c0_2] : memref<64x64xf32, #tpu.memory_space<vmem>>, vector<64x64xf32>
    %c0_3 = arith.constant 0 : index
    %c0_4 = arith.constant 0 : index
    %2 = vector.load %arg3[%c0_3, %c0_4] : memref<1x64xf32, #tpu.memory_space<vmem>>, vector<1x64xf32>
    %cst = arith.constant dense<0.000000e+00> : vector<2x64xf32>
    %3 = tpu.matmul %0, %1, %cst {dimension_numbers = #tpu.dot_dimension_numbers<[1], [0], [0], [1], [0, 0, 1, 1], [], []>} : vector<2x64xf32>, vector<64x64xf32>, vector<2x64xf32> -> vector<2x64xf32>
    %4 = vector.broadcast %2 : vector<1x64xf32> to vector<2x64xf32>
    %5 = arith.addf %3, %4 : vector<2x64xf32>
    %cst_5 = arith.constant 0.000000e+00 : f32
    %6 = vector.broadcast %cst_5 : f32 to vector<2x64xf32>
    %7 = arith.maximumf %5, %6 : vector<2x64xf32>
    %c0_6 = arith.constant 0 : index
    %c0_7 = arith.constant 0 : index
    %8 = vector.load %arg4[%c0_6, %c0_7] : memref<64x64xf32, #tpu.memory_space<vmem>>, vector<64x64xf32>
    %c0_8 = arith.constant 0 : index
    %c0_9 = arith.constant 0 : index
    %9 = vector.load %arg5[%c0_8, %c0_9] : memref<1x64xf32, #tpu.memory_space<vmem>>, vector<1x64xf32>
    %cst_10 = arith.constant dense<0.000000e+00> : vector<2x64xf32>
    %10 = tpu.matmul %7, %8, %cst_10 {dimension_numbers = #tpu.dot_dimension_numbers<[1], [0], [0], [1], [0, 0, 1, 1], [], []>} : vector<2x64xf32>, vector<64x64xf32>, vector<2x64xf32> -> vector<2x64xf32>
    %11 = vector.broadcast %9 : vector<1x64xf32> to vector<2x64xf32>
    %12 = arith.addf %10, %11 : vector<2x64xf32>
    %cst_11 = arith.constant 0.000000e+00 : f32
    %13 = vector.broadcast %cst_11 : f32 to vector<2x64xf32>
    %14 = arith.maximumf %12, %13 : vector<2x64xf32>
    %c0_12 = arith.constant 0 : index
    %c0_13 = arith.constant 0 : index
    %15 = vector.load %arg6[%c0_12, %c0_13] : memref<64x32xf32, #tpu.memory_space<vmem>>, vector<64x32xf32>
    %c0_14 = arith.constant 0 : index
    %c0_15 = arith.constant 0 : index
    %16 = vector.load %arg7[%c0_14, %c0_15] : memref<1x32xf32, #tpu.memory_space<vmem>>, vector<1x32xf32>
    %cst_16 = arith.constant dense<0.000000e+00> : vector<2x32xf32>
    %17 = tpu.matmul %14, %15, %cst_16 {dimension_numbers = #tpu.dot_dimension_numbers<[1], [0], [0], [1], [0, 0, 1, 1], [], []>} : vector<2x64xf32>, vector<64x32xf32>, vector<2x32xf32> -> vector<2x32xf32>
    %18 = vector.broadcast %16 : vector<1x32xf32> to vector<2x32xf32>
    %19 = arith.addf %17, %18 : vector<2x32xf32>
    %cst_17 = arith.constant 0.000000e+00 : f32
    %20 = vector.broadcast %cst_17 : f32 to vector<2x32xf32>
    %21 = arith.maximumf %19, %20 : vector<2x32xf32>
    %c0_18 = arith.constant 0 : index
    %c0_19 = arith.constant 0 : index
    %22 = vector.load %arg8[%c0_18, %c0_19] : memref<32x32xf32, #tpu.memory_space<vmem>>, vector<32x32xf32>
    %c0_20 = arith.constant 0 : index
    %c0_21 = arith.constant 0 : index
    %23 = vector.load %arg9[%c0_20, %c0_21] : memref<1x32xf32, #tpu.memory_space<vmem>>, vector<1x32xf32>
    %cst_22 = arith.constant dense<0.000000e+00> : vector<2x32xf32>
    %24 = tpu.matmul %21, %22, %cst_22 {dimension_numbers = #tpu.dot_dimension_numbers<[1], [0], [0], [1], [0, 0, 1, 1], [], []>} : vector<2x32xf32>, vector<32x32xf32>, vector<2x32xf32> -> vector<2x32xf32>
    %25 = vector.broadcast %23 : vector<1x32xf32> to vector<2x32xf32>
    %26 = arith.addf %24, %25 : vector<2x32xf32>
    %cst_23 = arith.constant 0.000000e+00 : f32
    %27 = vector.broadcast %cst_23 : f32 to vector<2x32xf32>
    %28 = arith.maximumf %26, %27 : vector<2x32xf32>
    %c0_24 = arith.constant 0 : index
    %c0_25 = arith.constant 0 : index
    %29 = vector.load %arg10[%c0_24, %c0_25] : memref<32x8xf32, #tpu.memory_space<vmem>>, vector<32x8xf32>
    %c0_26 = arith.constant 0 : index
    %c0_27 = arith.constant 0 : index
    %30 = vector.load %arg11[%c0_26, %c0_27] : memref<1x8xf32, #tpu.memory_space<vmem>>, vector<1x8xf32>
    %cst_28 = arith.constant dense<0.000000e+00> : vector<2x8xf32>
    %31 = tpu.matmul %28, %29, %cst_28 {dimension_numbers = #tpu.dot_dimension_numbers<[1], [0], [0], [1], [0, 0, 1, 1], [], []>} : vector<2x32xf32>, vector<32x8xf32>, vector<2x8xf32> -> vector<2x8xf32>
    %32 = vector.broadcast %30 : vector<1x8xf32> to vector<2x8xf32>
    %33 = arith.addf %31, %32 : vector<2x8xf32>
    %cst_29 = arith.constant 0.000000e+00 : f32
    %34 = vector.broadcast %cst_29 : f32 to vector<2x8xf32>
    %35 = arith.maximumf %33, %34 : vector<2x8xf32>
    %c0_30 = arith.constant 0 : index
    %c0_31 = arith.constant 0 : index
    %36 = vector.load %arg12[%c0_30, %c0_31] : memref<8x128xf32, #tpu.memory_space<vmem>>, vector<8x128xf32>
    %c0_32 = arith.constant 0 : index
    %c0_33 = arith.constant 0 : index
    %37 = vector.load %arg13[%c0_32, %c0_33] : memref<1x128xf32, #tpu.memory_space<vmem>>, vector<1x128xf32>
    %cst_34 = arith.constant dense<0.000000e+00> : vector<2x128xf32>
    %38 = tpu.matmul %35, %36, %cst_34 {dimension_numbers = #tpu.dot_dimension_numbers<[1], [0], [0], [1], [0, 0, 1, 1], [], []>} : vector<2x8xf32>, vector<8x128xf32>, vector<2x128xf32> -> vector<2x128xf32>
    %39 = vector.broadcast %37 : vector<1x128xf32> to vector<2x128xf32>
    %40 = arith.addf %38, %39 : vector<2x128xf32>
    %cst_35 = arith.constant 0.000000e+00 : f32
    %41 = vector.broadcast %cst_35 : f32 to vector<2x128xf32>
    %42 = arith.maximumf %40, %41 : vector<2x128xf32>
    %c0_36 = arith.constant 0 : index
    %c0_37 = arith.constant 0 : index
    %43 = vector.load %arg14[%c0_36, %c0_37] : memref<2x128xf32, #tpu.memory_space<vmem>>, vector<2x128xf32>
    tpu.vector_store %arg14[%c0_36, %c0_37], %42 {strides = array<i32>} : memref<2x128xf32, #tpu.memory_space<vmem>>, vector<2x128xf32>,
    return
  }
  func.func @transform_0(%arg0: i32) -> (i32, i32) {
    %c0_i32 = arith.constant 0 : i32
    %c0_i32_0 = arith.constant 0 : i32
    %c0_i32_1 = arith.constant 0 : i32
    return %c0_i32, %c0_i32_0 : i32, i32
  }
  func.func @transform_1(%arg0: i32) -> (i32, i32) {
    %c0_i32 = arith.constant 0 : i32
    %c0_i32_0 = arith.constant 0 : i32
    %c0_i32_1 = arith.constant 0 : i32
    return %c0_i32, %c0_i32_0 : i32, i32
  }
  func.func @transform_2(%arg0: i32) -> (i32, i32) {
    %c0_i32 = arith.constant 0 : i32
    %c0_i32_0 = arith.constant 0 : i32
    %c0_i32_1 = arith.constant 0 : i32
    return %c0_i32, %c0_i32_0 : i32, i32
  }
  func.func @transform_3(%arg0: i32) -> (i32, i32) {
    %c0_i32 = arith.constant 0 : i32
    %c0_i32_0 = arith.constant 0 : i32
    %c0_i32_1 = arith.constant 0 : i32
    return %c0_i32, %c0_i32_0 : i32, i32
  }
  func.func @transform_4(%arg0: i32) -> (i32, i32) {
    %c0_i32 = arith.constant 0 : i32
    %c0_i32_0 = arith.constant 0 : i32
    %c0_i32_1 = arith.constant 0 : i32
    return %c0_i32, %c0_i32_0 : i32, i32
  }
  func.func @transform_5(%arg0: i32) -> (i32, i32) {
    %c0_i32 = arith.constant 0 : i32
    %c0_i32_0 = arith.constant 0 : i32
    %c0_i32_1 = arith.constant 0 : i32
    return %c0_i32, %c0_i32_0 : i32, i32
  }
  func.func @transform_6(%arg0: i32) -> (i32, i32) {
    %c0_i32 = arith.constant 0 : i32
    %c0_i32_0 = arith.constant 0 : i32
    %c0_i32_1 = arith.constant 0 : i32
    return %c0_i32, %c0_i32_0 : i32, i32
  }
  func.func @transform_7(%arg0: i32) -> (i32, i32) {
    %c0_i32 = arith.constant 0 : i32
    %c0_i32_0 = arith.constant 0 : i32
    %c0_i32_1 = arith.constant 0 : i32
    return %c0_i32, %c0_i32_0 : i32, i32
  }
  func.func @transform_8(%arg0: i32) -> (i32, i32) {
    %c0_i32 = arith.constant 0 : i32
    %c0_i32_0 = arith.constant 0 : i32
    %c0_i32_1 = arith.constant 0 : i32
    return %c0_i32, %c0_i32_0 : i32, i32
  }
  func.func @transform_9(%arg0: i32) -> (i32, i32) {
    %c0_i32 = arith.constant 0 : i32
    %c0_i32_0 = arith.constant 0 : i32
    %c0_i32_1 = arith.constant 0 : i32
    return %c0_i32, %c0_i32_0 : i32, i32
  }
  func.func @transform_10(%arg0: i32) -> (i32, i32) {
    %c0_i32 = arith.constant 0 : i32
    %c0_i32_0 = arith.constant 0 : i32
    %c0_i32_1 = arith.constant 0 : i32
    return %c0_i32, %c0_i32_0 : i32, i32
  }
  func.func @transform_11(%arg0: i32) -> (i32, i32) {
    %c0_i32 = arith.constant 0 : i32
    %c0_i32_0 = arith.constant 0 : i32
    %c0_i32_1 = arith.constant 0 : i32
    return %c0_i32, %c0_i32_0 : i32, i32
  }
  func.func @transform_12(%arg0: i32) -> (i32, i32) {
    %c0_i32 = arith.constant 0 : i32
    %c0_i32_0 = arith.constant 0 : i32
    %c0_i32_1 = arith.constant 0 : i32
    return %c0_i32, %c0_i32_0 : i32, i32
  }
  func.func @transform_13(%arg0: i32) -> (i32, i32) {
    %c0_i32 = arith.constant 0 : i32
    %c0_i32_0 = arith.constant 0 : i32
    %c0_i32_1 = arith.constant 0 : i32
    return %c0_i32, %c0_i32_0 : i32, i32
  }
}

</mosaic_0001>

<llo_original>
// kernel: tpu_custom_call.1
$region0: #{tpu_custom_call.1}
  #allocation0 [shape = 'u32[]', space=smem, size = 0x4, offset = 0x4, fixed_abs, tag = 'smem constant byte address 0x4 - core index']
  #allocation1 [shape = 'u32[144,128]{1,0:T(1,128)}', space=vmem, size = 0x12000, scoped, tag = 'internal scratch']
  %s0 = inlined_call_operand.hbm [shape: f32[2,64], index: 0, kind: input, shape index: {}]
  %s1 = inlined_call_operand.vmem [shape: f32[64,64], index: 1, kind: input, shape index: {}]
  %s2 = inlined_call_operand.vmem [shape: f32[1,64], index: 2, kind: input, shape index: {}]
  %s3 = inlined_call_operand.vmem [shape: f32[64,64], index: 3, kind: input, shape index: {}]
  %s4 = inlined_call_operand.hbm [shape: f32[1,64], index: 4, kind: input, shape index: {}]
  %s5 = inlined_call_operand.vmem [shape: f32[64,32], index: 5, kind: input, shape index: {}]
  %s6 = inlined_call_operand.hbm [shape: f32[1,32], index: 6, kind: input, shape index: {}]
  %s7 = inlined_call_operand.vmem [shape: f32[32,32], index: 7, kind: input, shape index: {}]
  %s8 = inlined_call_operand.hbm [shape: f32[1,32], index: 8, kind: input, shape index: {}]
  %s9 = inlined_call_operand.vmem [shape: f32[32,8], index: 9, kind: input, shape index: {}]
  %s10 = inlined_call_operand.hbm [shape: f32[1,8], index: 10, kind: input, shape index: {}]
  %s11 = inlined_call_operand.vmem [shape: f32[8,128], index: 11, kind: input, shape index: {}]
  %s12 = inlined_call_operand.vmem [shape: f32[1,128], index: 12, kind: input, shape index: {}]
  %s13 = inlined_call_operand.hbm [shape: f32[2,128], index: 13, kind: output, shape index: {}]
  %s14 = sld [smem:[#allocation0]]
  $region82: #{tpu_custom_call.1} parent=0
    _
  %s16 = ssub.s32 1, %s14
  %s17 = scalar_select 0, %s16, %s14
  $region1: #{tpu_custom_call.1} parent=0
    #allocation2 [shape = 'u8[1024]{0}', space=vmem, size = 0x400, scoped, tag = 'input window, operand 0, single buffered']
    #allocation3 [shape = 's32[1]{0}', space=sflag, size = 0x4, scoped, tag = 'scoped memory for tpu_custom_call.1']
    #allocation4 [shape = 's32[1]{0}', space=sflag, size = 0x4, scoped, tag = 'scoped memory for tpu_custom_call.1']
    #allocation5 [shape = 'u8[512]{0}', space=vmem, size = 0x400, scoped, tag = 'input window, operand 4, single buffered']
    #allocation6 [shape = 's32[1]{0}', space=sflag, size = 0x4, scoped, tag = 'scoped memory for tpu_custom_call.1']
    #allocation7 [shape = 'u8[512]{0}', space=vmem, size = 0x400, scoped, tag = 'input window, operand 6, single buffered']
    #allocation8 [shape = 'u8[512]{0}', space=vmem, size = 0x400, scoped, tag = 'input window, operand 8, single buffered']
    #allocation9 [shape = 's32[1]{0}', space=sflag, size = 0x4, scoped, tag = 'scoped memory for tpu_custom_call.1']
    #allocation10 [shape = 'u8[512]{0}', space=vmem, size = 0x400, scoped, tag = 'input window, operand 10, single buffered']
    #allocation11 [shape = 'u8[1024]{0}', space=vmem, size = 0x400, scoped, tag = 'output window, operand 0, single buffered']
    %18 = vsyncpa [#allocation3], 0
    %19 = vsyncpa [#allocation6], 0
    %20 = vsyncpa [#allocation9], 0
    %21 = vsyncpa [#allocation4], 0
    // Predicated region
    $region2: #{tpu_custom_call.1} parent=1 // pred_check
      _
    $region3: #{tpu_custom_call.1} parent=1 // pred_check_branch
      %23 = sbr.rel (0) target = $region5
    $region4: #{tpu_custom_call.1} parent=1 // pred_region
      %s25 = ssub.s32 32, 32
      %26 = vsyncadd [#allocation3], %s25
      %s28 = sshll.u32 [#allocation2], 4
      %s29 = int_to_ptr.vmem [resolvable:$true] %s28
      %31 = dma.hbm_to_vmem [thread:$0]  %s0, 32, %s29, [#allocation3]
    $region5: #{tpu_custom_call.1} parent=1 // pred_fallthru
      _
    // Predicated region
    $region6: #{tpu_custom_call.1} parent=1 // pred_check
      _
    $region7: #{tpu_custom_call.1} parent=1 // pred_check_branch
      %33 = sbr.rel (0) target = $region9
    $region8: #{tpu_custom_call.1} parent=1 // pred_region
      _
    $region9: #{tpu_custom_call.1} parent=1 // pred_fallthru
      _
    // Predicated region
    $region10: #{tpu_custom_call.1} parent=1 // pred_check
      _
    $region11: #{tpu_custom_call.1} parent=1 // pred_check_branch
      %35 = sbr.rel (0) target = $region13
    $region12: #{tpu_custom_call.1} parent=1 // pred_region
      _
    $region13: #{tpu_custom_call.1} parent=1 // pred_fallthru
      _
    // Predicated region
    $region14: #{tpu_custom_call.1} parent=1 // pred_check
      _
    $region15: #{tpu_custom_call.1} parent=1 // pred_check_branch
      %37 = sbr.rel (0) target = $region17
    $region16: #{tpu_custom_call.1} parent=1 // pred_region
      _
    $region17: #{tpu_custom_call.1} parent=1 // pred_fallthru
      _
    // Predicated region
    $region18: #{tpu_custom_call.1} parent=1 // pred_check
      _
    $region19: #{tpu_custom_call.1} parent=1 // pred_check_branch
      %39 = sbr.rel (0) target = $region21
    $region20: #{tpu_custom_call.1} parent=1 // pred_region
      %s41 = ssub.s32 16, 16
      %42 = vsyncadd [#allocation6], %s41
      %s44 = sshll.u32 [#allocation5], 4
      %s45 = int_to_ptr.vmem [resolvable:$true] %s44
      %47 = dma.hbm_to_vmem [thread:$0]  %s4, 16, %s45, [#allocation6]
    $region21: #{tpu_custom_call.1} parent=1 // pred_fallthru
      _
    // Predicated region
    $region22: #{tpu_custom_call.1} parent=1 // pred_check
      _
    $region23: #{tpu_custom_call.1} parent=1 // pred_check_branch
      %49 = sbr.rel (0) target = $region25
    $region24: #{tpu_custom_call.1} parent=1 // pred_region
      _
    $region25: #{tpu_custom_call.1} parent=1 // pred_fallthru
      _
    // Predicated region
    $region26: #{tpu_custom_call.1} parent=1 // pred_check
      _
    $region27: #{tpu_custom_call.1} parent=1 // pred_check_branch
      %51 = sbr.rel (0) target = $region29
    $region28: #{tpu_custom_call.1} parent=1 // pred_region
      %s53 = ssub.s32 16, 16
      %54 = vsyncadd [#allocation6], %s53
      %s56 = sshll.u32 [#allocation7], 4
      %s57 = int_to_ptr.vmem [resolvable:$true] %s56
      %59 = dma.hbm_to_vmem [thread:$0]  %s6, 16, %s57, [#allocation6]
    $region29: #{tpu_custom_call.1} parent=1 // pred_fallthru
      _
    // Predicated region
    $region30: #{tpu_custom_call.1} parent=1 // pred_check
      _
    $region31: #{tpu_custom_call.1} parent=1 // pred_check_branch
      %61 = sbr.rel (0) target = $region33
    $region32: #{tpu_custom_call.1} parent=1 // pred_region
      _
    $region33: #{tpu_custom_call.1} parent=1 // pred_fallthru
      _
    // Predicated region
    $region34: #{tpu_custom_call.1} parent=1 // pred_check
      _
    $region35: #{tpu_custom_call.1} parent=1 // pred_check_branch
      %63 = sbr.rel (0) target = $region37
    $region36: #{tpu_custom_call.1} parent=1 // pred_region
      %s65 = ssub.s32 16, 16
      %66 = vsyncadd [#allocation9], %s65
      %s68 = sshll.u32 [#allocation8], 4
      %s69 = int_to_ptr.vmem [resolvable:$true] %s68
      %71 = dma.hbm_to_vmem [thread:$0]  %s8, 16, %s69, [#allocation9]
    $region37: #{tpu_custom_call.1} parent=1 // pred_fallthru
      _
    // Predicated region
    $region38: #{tpu_custom_call.1} parent=1 // pred_check
      _
    $region39: #{tpu_custom_call.1} parent=1 // pred_check_branch
      %73 = sbr.rel (0) target = $region41
    $region40: #{tpu_custom_call.1} parent=1 // pred_region
      _
    $region41: #{tpu_custom_call.1} parent=1 // pred_fallthru
      _
    // Predicated region
    $region42: #{tpu_custom_call.1} parent=1 // pred_check
      _
    $region43: #{tpu_custom_call.1} parent=1 // pred_check_branch
      %75 = sbr.rel (0) target = $region45
    $region44: #{tpu_custom_call.1} parent=1 // pred_region
      %s77 = ssub.s32 16, 16
      %78 = vsyncadd [#allocation9], %s77
      %s80 = sshll.u32 [#allocation10], 4
      %s81 = int_to_ptr.vmem [resolvable:$true] %s80
      %83 = dma.hbm_to_vmem [thread:$0]  %s10, 16, %s81, [#allocation9]
    $region45: #{tpu_custom_call.1} parent=1 // pred_fallthru
      _
    // Predicated region
    $region46: #{tpu_custom_call.1} parent=1 // pred_check
      _
    $region47: #{tpu_custom_call.1} parent=1 // pred_check_branch
      %85 = sbr.rel (0) target = $region49
    $region48: #{tpu_custom_call.1} parent=1 // pred_region
      _
    $region49: #{tpu_custom_call.1} parent=1 // pred_fallthru
      _
    // Predicated region
    $region50: #{tpu_custom_call.1} parent=1 // pred_check
      _
    $region51: #{tpu_custom_call.1} parent=1 // pred_check_branch
      %87 = sbr.rel (0) target = $region53
    $region52: #{tpu_custom_call.1} parent=1 // pred_region
      _
    $region53: #{tpu_custom_call.1} parent=1 // pred_fallthru
      _
    // Predicated region
    $region54: #{tpu_custom_call.1} parent=1 // pred_check
      _
    $region55: #{tpu_custom_call.1} parent=1 // pred_check_branch
      %89 = sbr.rel (0) target = $region57
    $region56: #{tpu_custom_call.1} parent=1 // pred_region
      %90 = dma.done [#allocation3], 32
    $region57: #{tpu_custom_call.1} parent=1 // pred_fallthru
      _
    // Predicated region
    $region58: #{tpu_custom_call.1} parent=1 // pred_check
      _
    $region59: #{tpu_custom_call.1} parent=1 // pred_check_branch
      %92 = sbr.rel (0) target = $region61
    $region60: #{tpu_custom_call.1} parent=1 // pred_region
      %93 = dma.done [#allocation6], 16
    $region61: #{tpu_custom_call.1} parent=1 // pred_fallthru
      _
    // Predicated region
    $region62: #{tpu_custom_call.1} parent=1 // pred_check
      _
    $region63: #{tpu_custom_call.1} parent=1 // pred_check_branch
      %95 = sbr.rel (0) target = $region65
    $region64: #{tpu_custom_call.1} parent=1 // pred_region
      %96 = dma.done [#allocation6], 16
    $region65: #{tpu_custom_call.1} parent=1 // pred_fallthru
      _
    // Predicated region
    $region66: #{tpu_custom_call.1} parent=1 // pred_check
      _
    $region67: #{tpu_custom_call.1} parent=1 // pred_check_branch
      %98 = sbr.rel (0) target = $region69
    $region68: #{tpu_custom_call.1} parent=1 // pred_region
      %99 = dma.done [#allocation9], 16
    $region69: #{tpu_custom_call.1} parent=1 // pred_fallthru
      _
    // Predicated region
    $region70: #{tpu_custom_call.1} parent=1 // pred_check
      _
    $region71: #{tpu_custom_call.1} parent=1 // pred_check_branch
      %101 = sbr.rel (0) target = $region73
    $region72: #{tpu_custom_call.1} parent=1 // pred_region
      %102 = dma.done [#allocation9], 16
    $region73: #{tpu_custom_call.1} parent=1 // pred_fallthru
      _
    %v103 = vld [vmem:[#allocation2] sm:$0x3]
    %v104 = vld [vmem:[%s1] sm:$0xff]
    %v105 = vld [vmem:[%s1 + $0x8] sm:$0xff]
    %v106 = vld [vmem:[%s1 + $0x10] sm:$0xff]
    %v107 = vld [vmem:[%s1 + $0x18] sm:$0xff]
    %v108 = vld [vmem:[%s1 + $0x20] sm:$0xff]
    %v109 = vld [vmem:[%s1 + $0x28] sm:$0xff]
    %v110 = vld [vmem:[%s1 + $0x30] sm:$0xff]
    %v111 = vld [vmem:[%s1 + $0x38] sm:$0xff]
    %v112 = vld [vmem:[%s2] sm:$0x1]
    %v114 = vlaneseq
    %v115 = vshrl.u32 %v114, 7
    %v116 = vsub.s32 0, %v115
    %v117 = vrot.slane %v112, %v116
    %vm119 = vcmask 523264
    %v121 = vsel %vm119, %v103, 0
    %123 = vmatprep.subr.mxu0 0.0
    %124 = vmatpush1.msra.mxu0 %v104
    %125 = vmatprep.subr.mxu0 0.0
    %126 = vmatpush1.msra.mxu0 %v105
    %127 = vmatprep.subr.mxu0 0.0
    %128 = vmatpush1.msra.mxu0 %v106
    %129 = vmatprep.subr.mxu0 0.0
    %130 = vmatpush1.msra.mxu0 %v107
    %131 = vmatprep.subr.mxu0 0.0
    %132 = vmatpush1.msra.mxu0 %v108
    %133 = vmatprep.subr.mxu0 0.0
    %134 = vmatpush1.msra.mxu0 %v109
    %135 = vmatprep.subr.mxu0 0.0
    %136 = vmatpush1.msra.mxu0 %v110
    %137 = vmatprep.subr.mxu0 0.0
    %138 = vmatpush1.msra.mxu0 %v111
    %139 = vmatprep.subr.mxu0 0.0
    %140 = vmatpush1.msra.mxu0 0.0
    %141 = vmatprep.subr.mxu0 0.0
    %142 = vmatpush1.msra.mxu0 0.0
    %143 = vmatprep.subr.mxu0 0.0
    %144 = vmatpush1.msra.mxu0 0.0
    %145 = vmatprep.subr.mxu0 0.0
    %146 = vmatpush1.msra.mxu0 0.0
    %147 = vmatprep.subr.mxu0 0.0
    %148 = vmatpush1.msra.mxu0 0.0
    %149 = vmatprep.subr.mxu0 0.0
    %150 = vmatpush1.msra.mxu0 0.0
    %151 = vmatprep.subr.mxu0 0.0
    %152 = vmatpush1.msra.mxu0 0.0
    %153 = vmatprep.subr.mxu0 0.0
    %154 = vmatpush1.msra.mxu0 0.0
    %155 = vmatprep.subr.mxu0 0.0
    %156 = vmatpush1.msra.mxu0 0.0
    %157 = vmatprep.subr.mxu0 0.0
    %158 = vmatpush1.msra.mxu0 0.0
    %159 = vmatprep.subr.mxu0 0.0
    %160 = vmatpush1.msra.mxu0 0.0
    %161 = vmatprep.subr.mxu0 0.0
    %162 = vmatpush1.msra.mxu0 0.0
    %163 = vmatprep.subr.mxu0 0.0
    %164 = vmatpush1.msra.mxu0 0.0
    %165 = vmatprep.subr.mxu0 0.0
    %166 = vmatpush1.msra.mxu0 0.0
    %167 = vmatprep.subr.mxu0 0.0
    %168 = vmatpush1.msra.mxu0 0.0
    %169 = vmatprep.subr.mxu0 0.0
    %170 = vmatpush1.msra.mxu0 0.0
    %171 = vmatprep.subr.mxu0 0.0
    %172 = vmatpush1.msra.mxu0 0.0
    %173 = vmatprep.subr.mxu0 0.0
    %174 = vmatpush1.msra.mxu0 0.0
    %175 = vmatprep.subr.mxu0 0.0
    %176 = vmatpush1.msra.mxu0 0.0
    %177 = vmatprep.subr.mxu0 0.0
    %178 = vmatpush1.msra.mxu0 0.0
    %179 = vmatprep.subr.mxu0 0.0
    %180 = vmatpush1.msra.mxu0 0.0
    %181 = vmatprep.subr.mxu0 0.0
    %182 = vmatpush1.msra.mxu0 0.0
    %183 = vmatprep.subr.mxu0 0.0
    %184 = vmatpush1.msra.mxu0 0.0
    %185 = vmatprep.subr.mxu0 0.0
    %186 = vmatpush1.msra.mxu0 0.0
    %187 = vmatprep.mubr.f32.mxu0 0.0
    %188 = vmatmul.mubr.f32.gmra.mrb[0].mxu0 %v121
    %v189 = vpop.f32.mrb[0].mxu0
    %v190 = vadd.f32 %v117, %v189
    %v191 = vpop.f32.mrb[0].mxu0
    %192 = vdwg.mxu0
    %v193 = vmax.f32 %v190, 0.0
    %v194 = vld [vmem:[%s3] sm:$0xff]
    %v195 = vld [vmem:[%s3 + $0x8] sm:$0xff]
    %v196 = vld [vmem:[%s3 + $0x10] sm:$0xff]
    %v197 = vld [vmem:[%s3 + $0x18] sm:$0xff]
    %v198 = vld [vmem:[%s3 + $0x20] sm:$0xff]
    %v199 = vld [vmem:[%s3 + $0x28] sm:$0xff]
    %v200 = vld [vmem:[%s3 + $0x30] sm:$0xff]
    %v201 = vld [vmem:[%s3 + $0x38] sm:$0xff]
    %v202 = vld [vmem:[#allocation5] sm:$0x1]
    %v204 = vlaneseq
    %v205 = vshrl.u32 %v204, 7
    %v206 = vsub.s32 0, %v205
    %v207 = vrot.slane %v202, %v206
    %v210 = vsel %vm119, %v193, 0
    %212 = vmatprep.subr.mxu0 0.0
    %213 = vmatpush1.msra.mxu0 %v194
    %214 = vmatprep.subr.mxu0 0.0
    %215 = vmatpush1.msra.mxu0 %v195
    %216 = vmatprep.subr.mxu0 0.0
    %217 = vmatpush1.msra.mxu0 %v196
    %218 = vmatprep.subr.mxu0 0.0
    %219 = vmatpush1.msra.mxu0 %v197
    %220 = vmatprep.subr.mxu0 0.0
    %221 = vmatpush1.msra.mxu0 %v198
    %222 = vmatprep.subr.mxu0 0.0
    %223 = vmatpush1.msra.mxu0 %v199
    %224 = vmatprep.subr.mxu0 0.0
    %225 = vmatpush1.msra.mxu0 %v200
    %226 = vmatprep.subr.mxu0 0.0
    %227 = vmatpush1.msra.mxu0 %v201
    %228 = vmatprep.subr.mxu0 0.0
    %229 = vmatpush1.msra.mxu0 0.0
    %230 = vmatprep.subr.mxu0 0.0
    %231 = vmatpush1.msra.mxu0 0.0
    %232 = vmatprep.subr.mxu0 0.0
    %233 = vmatpush1.msra.mxu0 0.0
    %234 = vmatprep.subr.mxu0 0.0
    %235 = vmatpush1.msra.mxu0 0.0
    %236 = vmatprep.subr.mxu0 0.0
    %237 = vmatpush1.msra.mxu0 0.0
    %238 = vmatprep.subr.mxu0 0.0
    %239 = vmatpush1.msra.mxu0 0.0
    %240 = vmatprep.subr.mxu0 0.0
    %241 = vmatpush1.msra.mxu0 0.0
    %242 = vmatprep.subr.mxu0 0.0
    %243 = vmatpush1.msra.mxu0 0.0
    %244 = vmatprep.subr.mxu0 0.0
    %245 = vmatpush1.msra.mxu0 0.0
    %246 = vmatprep.subr.mxu0 0.0
    %247 = vmatpush1.msra.mxu0 0.0
    %248 = vmatprep.subr.mxu0 0.0
    %249 = vmatpush1.msra.mxu0 0.0
    %250 = vmatprep.subr.mxu0 0.0
    %251 = vmatpush1.msra.mxu0 0.0
    %252 = vmatprep.subr.mxu0 0.0
    %253 = vmatpush1.msra.mxu0 0.0
    %254 = vmatprep.subr.mxu0 0.0
    %255 = vmatpush1.msra.mxu0 0.0
    %256 = vmatprep.subr.mxu0 0.0
    %257 = vmatpush1.msra.mxu0 0.0
    %258 = vmatprep.subr.mxu0 0.0
    %259 = vmatpush1.msra.mxu0 0.0
    %260 = vmatprep.subr.mxu0 0.0
    %261 = vmatpush1.msra.mxu0 0.0
    %262 = vmatprep.subr.mxu0 0.0
    %263 = vmatpush1.msra.mxu0 0.0
    %264 = vmatprep.subr.mxu0 0.0
    %265 = vmatpush1.msra.mxu0 0.0
    %266 = vmatprep.subr.mxu0 0.0
    %267 = vmatpush1.msra.mxu0 0.0
    %268 = vmatprep.subr.mxu0 0.0
    %269 = vmatpush1.msra.mxu0 0.0
    %270 = vmatprep.subr.mxu0 0.0
    %271 = vmatpush1.msra.mxu0 0.0
    %272 = vmatprep.subr.mxu0 0.0
    %273 = vmatpush1.msra.mxu0 0.0
    %274 = vmatprep.subr.mxu0 0.0
    %275 = vmatpush1.msra.mxu0 0.0
    %276 = vmatprep.mubr.f32.mxu0 0.0
    %277 = vmatmul.mubr.f32.gmra.mrb[0].mxu0 %v210
    %v278 = vpop.f32.mrb[0].mxu0
    %v279 = vadd.f32 %v207, %v278
    %v280 = vpop.f32.mrb[0].mxu0
    %281 = vdwg.mxu0
    %v282 = vmax.f32 %v279, 0.0
    %v283 = vld [vmem:[%s5] sm:$0xff]
    %v284 = vld [vmem:[%s5 + $0x8] sm:$0xff]
    %v285 = vld [vmem:[%s5 + $0x10] sm:$0xff]
    %v286 = vld [vmem:[%s5 + $0x18] sm:$0xff]
    %v287 = vld [vmem:[%s5 + $0x20] sm:$0xff]
    %v288 = vld [vmem:[%s5 + $0x28] sm:$0xff]
    %v289 = vld [vmem:[%s5 + $0x30] sm:$0xff]
    %v290 = vld [vmem:[%s5 + $0x38] sm:$0xff]
    %v291 = vld [vmem:[#allocation7] sm:$0x1]
    %v293 = vlaneseq
    %v294 = vshrl.u32 %v293, 7
    %v295 = vsub.s32 0, %v294
    %v296 = vrot.slane %v291, %v295
    %v299 = vsel %vm119, %v282, 0
    %301 = vmatprep.subr.mxu0 0.0
    %302 = vmatpush1.msra.mxu0 %v283
    %303 = vmatprep.subr.mxu0 0.0
    %304 = vmatpush1.msra.mxu0 %v284
    %305 = vmatprep.subr.mxu0 0.0
    %306 = vmatpush1.msra.mxu0 %v285
    %307 = vmatprep.subr.mxu0 0.0
    %308 = vmatpush1.msra.mxu0 %v286
    %309 = vmatprep.subr.mxu0 0.0
    %310 = vmatpush1.msra.mxu0 %v287
    %311 = vmatprep.subr.mxu0 0.0
    %312 = vmatpush1.msra.mxu0 %v288
    %313 = vmatprep.subr.mxu0 0.0
    %314 = vmatpush1.msra.mxu0 %v289
    %315 = vmatprep.subr.mxu0 0.0
    %316 = vmatpush1.msra.mxu0 %v290
    %317 = vmatprep.subr.mxu0 0.0
    %318 = vmatpush1.msra.mxu0 0.0
    %319 = vmatprep.subr.mxu0 0.0
    %320 = vmatpush1.msra.mxu0 0.0
    %321 = vmatprep.subr.mxu0 0.0
    %322 = vmatpush1.msra.mxu0 0.0
    %323 = vmatprep.subr.mxu0 0.0
    %324 = vmatpush1.msra.mxu0 0.0
    %325 = vmatprep.subr.mxu0 0.0
    %326 = vmatpush1.msra.mxu0 0.0
    %327 = vmatprep.subr.mxu0 0.0
    %328 = vmatpush1.msra.mxu0 0.0
    %329 = vmatprep.subr.mxu0 0.0
    %330 = vmatpush1.msra.mxu0 0.0
    %331 = vmatprep.subr.mxu0 0.0
    %332 = vmatpush1.msra.mxu0 0.0
    %333 = vmatprep.subr.mxu0 0.0
    %334 = vmatpush1.msra.mxu0 0.0
    %335 = vmatprep.subr.mxu0 0.0
    %336 = vmatpush1.msra.mxu0 0.0
    %337 = vmatprep.subr.mxu0 0.0
    %338 = vmatpush1.msra.mxu0 0.0
    %339 = vmatprep.subr.mxu0 0.0
    %340 = vmatpush1.msra.mxu0 0.0
    %341 = vmatprep.subr.mxu0 0.0
    %342 = vmatpush1.msra.mxu0 0.0
    %343 = vmatprep.subr.mxu0 0.0
    %344 = vmatpush1.msra.mxu0 0.0
    %345 = vmatprep.subr.mxu0 0.0
    %346 = vmatpush1.msra.mxu0 0.0
    %347 = vmatprep.subr.mxu0 0.0
    %348 = vmatpush1.msra.mxu0 0.0
    %349 = vmatprep.subr.mxu0 0.0
    %350 = vmatpush1.msra.mxu0 0.0
    %351 = vmatprep.subr.mxu0 0.0
    %352 = vmatpush1.msra.mxu0 0.0
    %353 = vmatprep.subr.mxu0 0.0
    %354 = vmatpush1.msra.mxu0 0.0
    %355 = vmatprep.subr.mxu0 0.0
    %356 = vmatpush1.msra.mxu0 0.0
    %357 = vmatprep.subr.mxu0 0.0
    %358 = vmatpush1.msra.mxu0 0.0
    %359 = vmatprep.subr.mxu0 0.0
    %360 = vmatpush1.msra.mxu0 0.0
    %361 = vmatprep.subr.mxu0 0.0
    %362 = vmatpush1.msra.mxu0 0.0
    %363 = vmatprep.subr.mxu0 0.0
    %364 = vmatpush1.msra.mxu0 0.0
    %365 = vmatprep.mubr.f32.mxu0 0.0
    %366 = vmatmul.mubr.f32.gmra.mrb[0].mxu0 %v299
    %v367 = vpop.f32.mrb[0].mxu0
    %v368 = vadd.f32 %v296, %v367
    %v369 = vpop.f32.mrb[0].mxu0
    %370 = vdwg.mxu0
    %v371 = vmax.f32 %v368, 0.0
    %v372 = vld [vmem:[%s7] sm:$0xff]
    %v373 = vld [vmem:[%s7 + $0x8] sm:$0xff]
    %v374 = vld [vmem:[%s7 + $0x10] sm:$0xff]
    %v375 = vld [vmem:[%s7 + $0x18] sm:$0xff]
    %v376 = vld [vmem:[#allocation8] sm:$0x1]
    %v378 = vlaneseq
    %v379 = vshrl.u32 %v378, 7
    %v380 = vsub.s32 0, %v379
    %v381 = vrot.slane %v376, %v380
    %vm383 = vcmask 261120
    %v385 = vsel %vm383, %v371, 0
    %387 = vmatprep.subr.mxu0 0.0
    %388 = vmatpush1.msra.mxu0 %v372
    %389 = vmatprep.subr.mxu0 0.0
    %390 = vmatpush1.msra.mxu0 %v373
    %391 = vmatprep.subr.mxu0 0.0
    %392 = vmatpush1.msra.mxu0 %v374
    %393 = vmatprep.subr.mxu0 0.0
    %394 = vmatpush1.msra.mxu0 %v375
    %395 = vmatprep.subr.mxu0 0.0
    %396 = vmatpush1.msra.mxu0 0.0
    %397 = vmatprep.subr.mxu0 0.0
    %398 = vmatpush1.msra.mxu0 0.0
    %399 = vmatprep.subr.mxu0 0.0
    %400 = vmatpush1.msra.mxu0 0.0
    %401 = vmatprep.subr.mxu0 0.0
    %402 = vmatpush1.msra.mxu0 0.0
    %403 = vmatprep.subr.mxu0 0.0
    %404 = vmatpush1.msra.mxu0 0.0
    %405 = vmatprep.subr.mxu0 0.0
    %406 = vmatpush1.msra.mxu0 0.0
    %407 = vmatprep.subr.mxu0 0.0
    %408 = vmatpush1.msra.mxu0 0.0
    %409 = vmatprep.subr.mxu0 0.0
    %410 = vmatpush1.msra.mxu0 0.0
    %411 = vmatprep.subr.mxu0 0.0
    %412 = vmatpush1.msra.mxu0 0.0
    %413 = vmatprep.subr.mxu0 0.0
    %414 = vmatpush1.msra.mxu0 0.0
    %415 = vmatprep.subr.mxu0 0.0
    %416 = vmatpush1.msra.mxu0 0.0
    %417 = vmatprep.subr.mxu0 0.0
    %418 = vmatpush1.msra.mxu0 0.0
    %419 = vmatprep.subr.mxu0 0.0
    %420 = vmatpush1.msra.mxu0 0.0
    %421 = vmatprep.subr.mxu0 0.0
    %422 = vmatpush1.msra.mxu0 0.0
    %423 = vmatprep.subr.mxu0 0.0
    %424 = vmatpush1.msra.mxu0 0.0
    %425 = vmatprep.subr.mxu0 0.0
    %426 = vmatpush1.msra.mxu0 0.0
    %427 = vmatprep.subr.mxu0 0.0
    %428 = vmatpush1.msra.mxu0 0.0
    %429 = vmatprep.subr.mxu0 0.0
    %430 = vmatpush1.msra.mxu0 0.0
    %431 = vmatprep.subr.mxu0 0.0
    %432 = vmatpush1.msra.mxu0 0.0
    %433 = vmatprep.subr.mxu0 0.0
    %434 = vmatpush1.msra.mxu0 0.0
    %435 = vmatprep.subr.mxu0 0.0
    %436 = vmatpush1.msra.mxu0 0.0
    %437 = vmatprep.subr.mxu0 0.0
    %438 = vmatpush1.msra.mxu0 0.0
    %439 = vmatprep.subr.mxu0 0.0
    %440 = vmatpush1.msra.mxu0 0.0
    %441 = vmatprep.subr.mxu0 0.0
    %442 = vmatpush1.msra.mxu0 0.0
    %443 = vmatprep.subr.mxu0 0.0
    %444 = vmatpush1.msra.mxu0 0.0
    %445 = vmatprep.subr.mxu0 0.0
    %446 = vmatpush1.msra.mxu0 0.0
    %447 = vmatprep.subr.mxu0 0.0
    %448 = vmatpush1.msra.mxu0 0.0
    %449 = vmatprep.subr.mxu0 0.0
    %450 = vmatpush1.msra.mxu0 0.0
    %451 = vmatprep.mubr.f32.mxu0 0.0
    %452 = vmatmul.mubr.f32.gmra.mrb[0].mxu0 %v385
    %v453 = vpop.f32.mrb[0].mxu0
    %v454 = vadd.f32 %v381, %v453
    %v455 = vpop.f32.mrb[0].mxu0
    %456 = vdwg.mxu0
    %v457 = vmax.f32 %v454, 0.0
    %v458 = vld [vmem:[%s9] sm:$0xff]
    %v459 = vld [vmem:[%s9 + $0x8] sm:$0xff]
    %v460 = vld [vmem:[%s9 + $0x10] sm:$0xff]
    %v461 = vld [vmem:[%s9 + $0x18] sm:$0xff]
    %v462 = vld [vmem:[#allocation10] sm:$0x1]
    %v464 = vlaneseq
    %v465 = vshrl.u32 %v464, 7
    %v466 = vsub.s32 0, %v465
    %v467 = vrot.slane %v462, %v466
    %v470 = vsel %vm383, %v457, 0
    %472 = vmatprep.subr.mxu0 0.0
    %473 = vmatpush1.msra.mxu0 %v458
    %474 = vmatprep.subr.mxu0 0.0
    %475 = vmatpush1.msra.mxu0 %v459
    %476 = vmatprep.subr.mxu0 0.0
    %477 = vmatpush1.msra.mxu0 %v460
    %478 = vmatprep.subr.mxu0 0.0
    %479 = vmatpush1.msra.mxu0 %v461
    %480 = vmatprep.subr.mxu0 0.0
    %481 = vmatpush1.msra.mxu0 0.0
    %482 = vmatprep.subr.mxu0 0.0
    %483 = vmatpush1.msra.mxu0 0.0
    %484 = vmatprep.subr.mxu0 0.0
    %485 = vmatpush1.msra.mxu0 0.0
    %486 = vmatprep.subr.mxu0 0.0
    %487 = vmatpush1.msra.mxu0 0.0
    %488 = vmatprep.subr.mxu0 0.0
    %489 = vmatpush1.msra.mxu0 0.0
    %490 = vmatprep.subr.mxu0 0.0
    %491 = vmatpush1.msra.mxu0 0.0
    %492 = vmatprep.subr.mxu0 0.0
    %493 = vmatpush1.msra.mxu0 0.0
    %494 = vmatprep.subr.mxu0 0.0
    %495 = vmatpush1.msra.mxu0 0.0
    %496 = vmatprep.subr.mxu0 0.0
    %497 = vmatpush1.msra.mxu0 0.0
    %498 = vmatprep.subr.mxu0 0.0
    %499 = vmatpush1.msra.mxu0 0.0
    %500 = vmatprep.subr.mxu0 0.0
    %501 = vmatpush1.msra.mxu0 0.0
    %502 = vmatprep.subr.mxu0 0.0
    %503 = vmatpush1.msra.mxu0 0.0
    %504 = vmatprep.subr.mxu0 0.0
    %505 = vmatpush1.msra.mxu0 0.0
    %506 = vmatprep.subr.mxu0 0.0
    %507 = vmatpush1.msra.mxu0 0.0
    %508 = vmatprep.subr.mxu0 0.0
    %509 = vmatpush1.msra.mxu0 0.0
    %510 = vmatprep.subr.mxu0 0.0
    %511 = vmatpush1.msra.mxu0 0.0
    %512 = vmatprep.subr.mxu0 0.0
    %513 = vmatpush1.msra.mxu0 0.0
    %514 = vmatprep.subr.mxu0 0.0
    %515 = vmatpush1.msra.mxu0 0.0
    %516 = vmatprep.subr.mxu0 0.0
    %517 = vmatpush1.msra.mxu0 0.0
    %518 = vmatprep.subr.mxu0 0.0
    %519 = vmatpush1.msra.mxu0 0.0
    %520 = vmatprep.subr.mxu0 0.0
    %521 = vmatpush1.msra.mxu0 0.0
    %522 = vmatprep.subr.mxu0 0.0
    %523 = vmatpush1.msra.mxu0 0.0
    %524 = vmatprep.subr.mxu0 0.0
    %525 = vmatpush1.msra.mxu0 0.0
    %526 = vmatprep.subr.mxu0 0.0
    %527 = vmatpush1.msra.mxu0 0.0
    %528 = vmatprep.subr.mxu0 0.0
    %529 = vmatpush1.msra.mxu0 0.0
    %530 = vmatprep.subr.mxu0 0.0
    %531 = vmatpush1.msra.mxu0 0.0
    %532 = vmatprep.subr.mxu0 0.0
    %533 = vmatpush1.msra.mxu0 0.0
    %534 = vmatprep.subr.mxu0 0.0
    %535 = vmatpush1.msra.mxu0 0.0
    %536 = vmatprep.mubr.f32.mxu0 0.0
    %537 = vmatmul.mubr.f32.gmra.mrb[0].mxu0 %v470
    %v538 = vpop.f32.mrb[0].mxu0
    %v539 = vadd.f32 %v467, %v538
    %v540 = vpop.f32.mrb[0].mxu0
    %541 = vdwg.mxu0
    %v542 = vmax.f32 %v539, 0.0
    %v543 = vld [vmem:[%s11] sm:$0xff]
    %v544 = vld [vmem:[%s12] sm:$0x1]
    %v546 = vlaneseq
    %v547 = vshrl.u32 %v546, 7
    %v548 = vsub.s32 0, %v547
    %v549 = vrot.slane %v544, %v548
    %vm551 = vcmask 64512
    %v553 = vsel %vm551, %v542, 0
    %555 = vmatprep.subr.mxu0 0.0
    %556 = vmatpush1.msra.mxu0 %v543
    %557 = vmatprep.subr.mxu0 0.0
    %558 = vmatpush1.msra.mxu0 0.0
    %559 = vmatprep.subr.mxu0 0.0
    %560 = vmatpush1.msra.mxu0 0.0
    %561 = vmatprep.subr.mxu0 0.0
    %562 = vmatpush1.msra.mxu0 0.0
    %563 = vmatprep.subr.mxu0 0.0
    %564 = vmatpush1.msra.mxu0 0.0
    %565 = vmatprep.subr.mxu0 0.0
    %566 = vmatpush1.msra.mxu0 0.0
    %567 = vmatprep.subr.mxu0 0.0
    %568 = vmatpush1.msra.mxu0 0.0
    %569 = vmatprep.subr.mxu0 0.0
    %570 = vmatpush1.msra.mxu0 0.0
    %571 = vmatprep.subr.mxu0 0.0
    %572 = vmatpush1.msra.mxu0 0.0
    %573 = vmatprep.subr.mxu0 0.0
    %574 = vmatpush1.msra.mxu0 0.0
    %575 = vmatprep.subr.mxu0 0.0
    %576 = vmatpush1.msra.mxu0 0.0
    %577 = vmatprep.subr.mxu0 0.0
    %578 = vmatpush1.msra.mxu0 0.0
    %579 = vmatprep.subr.mxu0 0.0
    %580 = vmatpush1.msra.mxu0 0.0
    %581 = vmatprep.subr.mxu0 0.0
    %582 = vmatpush1.msra.mxu0 0.0
    %583 = vmatprep.subr.mxu0 0.0
    %584 = vmatpush1.msra.mxu0 0.0
    %585 = vmatprep.subr.mxu0 0.0
    %586 = vmatpush1.msra.mxu0 0.0
    %587 = vmatprep.subr.mxu0 0.0
    %588 = vmatpush1.msra.mxu0 0.0
    %589 = vmatprep.subr.mxu0 0.0
    %590 = vmatpush1.msra.mxu0 0.0
    %591 = vmatprep.subr.mxu0 0.0
    %592 = vmatpush1.msra.mxu0 0.0
    %593 = vmatprep.subr.mxu0 0.0
    %594 = vmatpush1.msra.mxu0 0.0
    %595 = vmatprep.subr.mxu0 0.0
    %596 = vmatpush1.msra.mxu0 0.0
    %597 = vmatprep.subr.mxu0 0.0
    %598 = vmatpush1.msra.mxu0 0.0
    %599 = vmatprep.subr.mxu0 0.0
    %600 = vmatpush1.msra.mxu0 0.0
    %601 = vmatprep.subr.mxu0 0.0
    %602 = vmatpush1.msra.mxu0 0.0
    %603 = vmatprep.subr.mxu0 0.0
    %604 = vmatpush1.msra.mxu0 0.0
    %605 = vmatprep.subr.mxu0 0.0
    %606 = vmatpush1.msra.mxu0 0.0
    %607 = vmatprep.subr.mxu0 0.0
    %608 = vmatpush1.msra.mxu0 0.0
    %609 = vmatprep.subr.mxu0 0.0
    %610 = vmatpush1.msra.mxu0 0.0
    %611 = vmatprep.subr.mxu0 0.0
    %612 = vmatpush1.msra.mxu0 0.0
    %613 = vmatprep.subr.mxu0 0.0
    %614 = vmatpush1.msra.mxu0 0.0
    %615 = vmatprep.subr.mxu0 0.0
    %616 = vmatpush1.msra.mxu0 0.0
    %617 = vmatprep.subr.mxu0 0.0
    %618 = vmatpush1.msra.mxu0 0.0
    %619 = vmatprep.mubr.f32.mxu0 0.0
    %620 = vmatmul.mubr.f32.gmra.mrb[0].mxu0 %v553
    %v621 = vpop.f32.mrb[0].mxu0
    %v622 = vadd.f32 %v549, %v621
    %v623 = vpop.f32.mrb[0].mxu0
    %624 = vdwg.mxu0
    %v625 = vmax.f32 %v622, 0.0
    %626 = vst [vmem:[#allocation11] sm:$0x3] %v625
    // Predicated region
    $region74: #{tpu_custom_call.1} parent=1 // pred_check
      _
    $region75: #{tpu_custom_call.1} parent=1 // pred_check_branch
      %628 = sbr.rel (0) target = $region77
    $region76: #{tpu_custom_call.1} parent=1 // pred_region
      %s630 = ssub.s32 32, 32
      %631 = vsyncadd [#allocation4], %s630
      %s633 = sshll.u32 [#allocation11], 4
      %s634 = int_to_ptr.vmem [resolvable:$true] %s633
      %636 = dma.vmem_to_hbm [thread:$0]  %s634, 32, %s13, [#allocation4]
    $region77: #{tpu_custom_call.1} parent=1 // pred_fallthru
      _
    // Predicated region
    $region78: #{tpu_custom_call.1} parent=1 // pred_check
      _
    $region79: #{tpu_custom_call.1} parent=1 // pred_check_branch
      %638 = sbr.rel (0) target = $region81
    $region80: #{tpu_custom_call.1} parent=1 // pred_region
      %639 = dma.done [#allocation4], 32
    $region81: #{tpu_custom_call.1} parent=1 // pred_fallthru
      _
    %640 = vsyncpa [#allocation3], 1
    %641 = vsyncpa [#allocation6], 1
    %642 = vsyncpa [#allocation9], 1
    %643 = vsyncpa [#allocation4], 1

</llo_original>
